<compile_context>
chip_gen: v5e
topology: v5e:2x2
jax: 0.10.0
libtpu: 0.0.40
codegen_flags: <defaults>
</compile_context>

<pallas_src>
import functools

import jax
import jax.numpy as jnp
from jax.experimental import pallas as pl
from jax.experimental.pallas import tpu as pltpu


_TM_STREAM = 1024    # row-tile target when weights are streamed from HBM
_TM_RESIDENT = 512   # row-tile target when weights stay resident in VMEM
_FF_INNER = 512      # in-kernel static chunk width along ff_dim


def _pad_to(n, m):
    return ((n + m - 1) // m) * m


def _vmem_capacity_bytes():
    """Physical per-core VMEM; conservative v7x default if the query fails."""
    try:
        cap = getattr(pltpu.get_tpu_info(), "vmem_capacity_bytes", None)
        if cap:
            return min(max(int(cap), 32 << 20), 128 << 20)
    except Exception:
        pass
    return 64 << 20


def _rowtile_bytes(tm, md_pad, ff_inner):
    # bf16 x tile (double-buffered) + f32 out tile (double-buffered) + one
    # f32 output-width temp + ~two (tm, ff_inner) f32 temps in the chunk loop.
    return tm * md_pad * (2 * 2 + 4 * 2 + 4) + tm * ff_inner * 2 * 4


def _spec(shape, index_map, buffers=None):
    """BlockSpec with an optional buffer-count request (graceful fallback)."""
    if buffers is None:
        return pl.BlockSpec(shape, index_map)
    try:
        return pl.BlockSpec(shape, index_map, pipeline_mode=pl.Buffered(buffers))
    except (TypeError, AttributeError):
        return pl.BlockSpec(shape, index_map)


def ffn_kernel(x_ref, w1_ref, b1_ref, w2_ref, b2_ref, o_ref, *, ff_inner):
    """One (row tile i, ff chunk k) grid step.

    x_ref : (tm, md_pad)   bf16        w1_ref: (md_pad, tf) bf16
    b1_ref: (1, tf)        f32         w2_ref: (tf, md_pad) bf16
    b2_ref: (1, md_pad)    f32         o_ref : (tm, md_pad) f32 (resident over k)
    """
    @pl.when(pl.program_id(1) == 0)
    def _():
        # fold the output bias into the accumulator initialization
        o_ref[...] = jnp.broadcast_to(b2_ref[...], o_ref.shape)

    x = x_ref[...]
    tf = w1_ref.shape[1]
    # Static in-kernel chunking of the ff axis: bounds the (tm, ff) f32
    # intermediate to (tm, ff_inner) even when the weights are fully resident,
    # and interleaves matmul1 / ReLU / matmul2 instead of phase-by-phase.
    for c in range(0, tf, ff_inner):
        h = jnp.dot(x, w1_ref[:, c:c + ff_inner],
                    preferred_element_type=jnp.float32)
        h = jnp.maximum(h + b1_ref[:, c:c + ff_inner], 0.0)
        # dropout(p=0.1): identity (eval-mode semantics)
        o_ref[...] += jnp.dot(h.astype(x.dtype), w2_ref[c:c + ff_inner, :],
                              preferred_element_type=jnp.float32)


def _make_config(model_dim, ff_dim):
    """Generation-aware tiling / VMEM configuration (independent of M)."""
    cap = _vmem_capacity_bytes()
    vmem_limit = (cap // 16) * 13              # headroom for Mosaic internals
    budget = vmem_limit - (4 << 20)            # margin for misc buffers

    md_pad = _pad_to(model_dim, 128)
    ff128 = _pad_to(ff_dim, 128)

    # bf16 W1^T + W2^T + f32 b1/b2, single-buffered (fully resident case)
    resident_w_bytes = 4 * md_pad * ff128 + 4 * ff128 + 4 * md_pad

    if resident_w_bytes <= budget // 2:
        # Weights stay resident for the whole grid: each weight byte is DMA'd
        # once per call, independent of the number of row tiles.
        tf = ff128
        tm_target = _TM_RESIDENT
        w_vmem = resident_w_bytes
    else:
        # Stream ff in chunks (double-buffered weight tiles). Arithmetic
        # intensity equals tm flop/byte, so favor a big row tile and give the
        # leftover VMEM to tf.
        per_col = 2 * (2 * 2 * md_pad + 4)     # both weight tiles + b1, 2 bufs
        tm_target = _TM_STREAM
        rt = _rowtile_bytes(tm_target, md_pad, _FF_INNER)
        while tm_target > 8 and rt + per_col * 128 > budget:
            tm_target = max(8, _pad_to(tm_target // 2, 8))
            rt = _rowtile_bytes(tm_target, md_pad, _FF_INNER)
        avail = max(budget - rt, per_col * 128)
        tf = min(ff128, max(128, (avail // per_col // 512) * 512))
        w_vmem = per_col * tf

    ff_inner = next(c for c in (_FF_INNER, 256, 128) if tf % c == 0)
    ff_pad = _pad_to(ff_dim, tf)               # zero padding is inert

    return dict(md_pad=md_pad, ff_pad=ff_pad, tf=tf, ff_inner=ff_inner,
                tm_target=tm_target, w_vmem=w_vmem,
                budget=budget, vmem_limit=vmem_limit)


def _choose_tm(M, cfg):
    """Row tile for a given row count (balanced to limit padding waste)."""
    tm_target = cfg["tm_target"]
    n_m = max(1, -(-M // tm_target))
    tm = max(8, min(tm_target, _pad_to(-(-M // n_m), 8)))
    while tm > 8 and (_rowtile_bytes(tm, cfg["md_pad"], cfg["ff_inner"])
                      + cfg["w_vmem"]) > cfg["budget"]:
        tm = max(8, _pad_to(tm // 2, 8))
    # Resident weights + a single row tile: halve tm so both v7x TensorCores
    # get work (weights are still read from HBM only once either way).
    if cfg["tf"] == cfg["ff_pad"] and _pad_to(M, tm) // tm == 1 and tm >= 16:
        tm = _pad_to(tm // 2, 8)
    return tm


def make_positionwise_ffn(w1, b1, w2, b2):
    """Packs PyTorch-layout parameters once (transpose + pad + bf16 cast) and
    returns a jitted apply(x) computing w_2(relu(w_1(x) + b1)) + b2.

    w1: (ff_dim, model_dim), b1: (ff_dim,)
    w2: (model_dim, ff_dim), b2: (model_dim,)
    """
    ff_dim, model_dim = w1.shape
    cfg = _make_config(model_dim, ff_dim)
    md_pad, ff_pad = cfg["md_pad"], cfg["ff_pad"]
    tf, ff_inner = cfg["tf"], cfg["ff_inner"]
    n_k = ff_pad // tf

    # one-time layout plumbing (hoisted out of the per-call path)
    w1t = jnp.pad(w1.T.astype(jnp.bfloat16),
                  ((0, md_pad - model_dim), (0, ff_pad - ff_dim)))
    w2t = jnp.pad(w2.T.astype(jnp.bfloat16),
                  ((0, ff_pad - ff_dim), (0, md_pad - model_dim)))
    b1r = jnp.pad(b1.astype(jnp.float32), (0, ff_pad - ff_dim)).reshape(1, ff_pad)
    b2r = jnp.pad(b2.astype(jnp.float32), (0, md_pad - model_dim)).reshape(1, md_pad)

    kernel = functools.partial(ffn_kernel, ff_inner=ff_inner)

    @jax.jit
    def _apply(x, w1t, b1r, w2t, b2r):
        batch, seq, _ = x.shape
        M = batch * seq
        tm = _choose_tm(M, cfg)
        M_pad = _pad_to(M, tm)
        n_m = M_pad // tm

        x2 = x.reshape(M, model_dim).astype(jnp.bfloat16)
        if M_pad != M or md_pad != model_dim:
            x2 = jnp.pad(x2, ((0, M_pad - M), (0, md_pad - model_dim)))

        # single-buffer weights when they are resident (constant block index)
        w_buffers = 1 if n_k == 1 else None

        grid_spec = pltpu.PrefetchScalarGridSpec(
            num_scalar_prefetch=0,
            grid=(n_m, n_k),
            in_specs=[
                _spec((tm, md_pad), lambda i, k: (i, 0)),             # x rows
                _spec((md_pad, tf), lambda i, k: (0, k), w_buffers),  # W1^T tile
                _spec((1, tf),      lambda i, k: (0, k), w_buffers),  # b1 tile
                _spec((tf, md_pad), lambda i, k: (k, 0), w_buffers),  # W2^T tile
                _spec((1, md_pad),  lambda i, k: (0, 0), 1),          # b2 (resident)
            ],
            out_specs=pl.BlockSpec((tm, md_pad), lambda i, k: (i, 0)),
        )

        out = pl.pallas_call(
            kernel,
            out_shape=jax.ShapeDtypeStruct((M_pad, md_pad), jnp.float32),
            grid_spec=grid_spec,
            compiler_params=pltpu.CompilerParams(
                dimension_semantics=("parallel", "arbitrary"),
                vmem_limit_bytes=cfg["vmem_limit"],
            ),
        )(x2, w1t, b1r, w2t, b2r)

        out = out[:M, :model_dim].reshape(batch, seq, model_dim)
        return out.astype(x.dtype)

    def apply(x):
        return _apply(x, w1t, b1r, w2t, b2r)

    return apply


def positionwise_ffn(x, w1, b1, w2, b2):
    """One-shot convenience wrapper (packs weights per call)."""
    return make_positionwise_ffn(w1, b1, w2, b2)(x)


def init_params(key, model_dim, ff_dim):
    """Deterministic init mimicking torch.nn.Linear (uniform +/- 1/sqrt(fan_in))."""
    k1, k2, k3, k4 = jax.random.split(key, 4)
    bound1 = 1.0 / (model_dim ** 0.5)
    bound2 = 1.0 / (ff_dim ** 0.5)
    w1 = jax.random.uniform(k1, (ff_dim, model_dim), jnp.float32, -bound1, bound1)
    b1 = jax.random.uniform(k2, (ff_dim,), jnp.float32, -bound1, bound1)
    w2 = jax.random.uniform(k3, (model_dim, ff_dim), jnp.float32, -bound2, bound2)
    b2 = jax.random.uniform(k4, (model_dim,), jnp.float32, -bound2, bound2)
    return w1, b1, w2, b2


if __name__ == "__main__":
    batch, seq, model_dim, ff_dim = 2, 8, 32, 64
    key = jax.random.PRNGKey(0)
    kx, kp = jax.random.split(key)
    x = jax.random.normal(kx, (batch, seq, model_dim), jnp.float32)
    w1, b1, w2, b2 = init_params(kp, model_dim, ff_dim)

    ffn = make_positionwise_ffn(w1, b1, w2, b2)   # pack weights once
    y = jax.block_until_ready(ffn(x))

    # reference (pure JAX f32, eval-mode dropout = identity); tolerance
    # loosened because the kernel feeds bf16 operands to the MXU.
    ref = jnp.maximum(x @ w1.T + b1, 0.0) @ w2.T + b2
    assert y.shape == (batch, seq, model_dim)
    assert jnp.allclose(y, ref, atol=3e-2, rtol=3e-2), "mismatch vs reference"
    print("KERNEL_OK")
</pallas_src>

<mosaic_0001>
module attributes {stable_mosaic.version = 11 : i64} {
  func.func @ffn_kernel(%arg0: i32, %arg1: i32, %arg2: memref<8x128xbf16, #tpu.memory_space<vmem>>, %arg3: memref<128x128xbf16, #tpu.memory_space<vmem>>, %arg4: memref<1x128xf32, #tpu.memory_space<vmem>>, %arg5: memref<128x128xbf16, #tpu.memory_space<vmem>>, %arg6: memref<1x128xf32, #tpu.memory_space<vmem>>, %arg7: memref<8x128xf32, #tpu.memory_space<vmem>>) attributes {dimension_semantics = [#tpu.dimension_semantics<parallel>, #tpu.dimension_semantics<arbitrary>], iteration_bounds = array<i64: 2, 1>, scalar_prefetch = 0 : i64, scratch_operands = 0 : i64, tpu.core_type = #tpu.core_type<tc>, window_params = [{transform_indices = @transform_0, window_bounds = array<i64: 8, 128>}, {pipeline_mode = #tpu.pipeline_mode<synchronous>, transform_indices = @transform_1, window_bounds = array<i64: 128, 128>}, {pipeline_mode = #tpu.pipeline_mode<synchronous>, transform_indices = @transform_2, window_bounds = array<i64: 1, 128>}, {pipeline_mode = #tpu.pipeline_mode<synchronous>, transform_indices = @transform_3, window_bounds = array<i64: 128, 128>}, {pipeline_mode = #tpu.pipeline_mode<synchronous>, transform_indices = @transform_4, window_bounds = array<i64: 1, 128>}, {transform_indices = @transform_5, window_bounds = array<i64: 8, 128>}]} {
    %c0_i32 = arith.constant 0 : i32
    %0 = arith.cmpi eq, %arg1, %c0_i32 : i32
    %1 = arith.extui %0 : i1 to i32
    %c0_i32_0 = arith.constant 0 : i32
    %2 = arith.cmpi ne, %1, %c0_i32_0 : i32
    scf.if %2 {
      %c0_14 = arith.constant 0 : index
      %c0_15 = arith.constant 0 : index
      %17 = vector.load %arg6[%c0_14, %c0_15] : memref<1x128xf32, #tpu.memory_space<vmem>>, vector<1x128xf32>
      %18 = vector.shape_cast %17 : vector<1x128xf32> to vector<1x128xf32>
      %19 = vector.broadcast %18 : vector<1x128xf32> to vector<8x128xf32>
      %c0_16 = arith.constant 0 : index
      %c0_17 = arith.constant 0 : index
      %20 = vector.load %arg7[%c0_16, %c0_17] : memref<8x128xf32, #tpu.memory_space<vmem>>, vector<8x128xf32>
      tpu.vector_store %arg7[%c0_16, %c0_17], %19 {strides = array<i32>} : memref<8x128xf32, #tpu.memory_space<vmem>>, vector<8x128xf32>,
    } else {
    }
    %c0 = arith.constant 0 : index
    %c0_1 = arith.constant 0 : index
    %3 = vector.load %arg2[%c0, %c0_1] : memref<8x128xbf16, #tpu.memory_space<vmem>>, vector<8x128xbf16>
    %c0_2 = arith.constant 0 : index
    %c0_3 = arith.constant 0 : index
    %4 = vector.load %arg3[%c0_2, %c0_3] : memref<128x128xbf16, #tpu.memory_space<vmem>>, vector<128x128xbf16>
    %cst = arith.constant dense<0.000000e+00> : vector<8x128xf32>
    %5 = tpu.matmul %3, %4, %cst {dimension_numbers = #tpu.dot_dimension_numbers<[1], [0], [0], [1], [0, 0, 1, 1], [], []>} : vector<8x128xbf16>, vector<128x128xbf16>, vector<8x128xf32> -> vector<8x128xf32>
    %c0_4 = arith.constant 0 : index
    %c0_5 = arith.constant 0 : index
    %6 = vector.load %arg4[%c0_4, %c0_5] : memref<1x128xf32, #tpu.memory_space<vmem>>, vector<1x128xf32>
    %7 = vector.broadcast %6 : vector<1x128xf32> to vector<8x128xf32>
    %8 = arith.addf %5, %7 : vector<8x128xf32>
    %cst_6 = arith.constant 0.000000e+00 : f32
    %9 = vector.broadcast %cst_6 : f32 to vector<8x128xf32>
    %10 = arith.maximumf %8, %9 : vector<8x128xf32>
    %c0_7 = arith.constant 0 : index
    %c0_8 = arith.constant 0 : index
    %11 = vector.load %arg7[%c0_7, %c0_8] : memref<8x128xf32, #tpu.memory_space<vmem>>, vector<8x128xf32>
    %12 = arith.truncf %10 : vector<8x128xf32> to vector<8x128xbf16>
    %c0_9 = arith.constant 0 : index
    %c0_10 = arith.constant 0 : index
    %13 = vector.load %arg5[%c0_9, %c0_10] : memref<128x128xbf16, #tpu.memory_space<vmem>>, vector<128x128xbf16>
    %cst_11 = arith.constant dense<0.000000e+00> : vector<8x128xf32>
    %14 = tpu.matmul %12, %13, %cst_11 {dimension_numbers = #tpu.dot_dimension_numbers<[1], [0], [0], [1], [0, 0, 1, 1], [], []>} : vector<8x128xbf16>, vector<128x128xbf16>, vector<8x128xf32> -> vector<8x128xf32>
    %15 = arith.addf %11, %14 : vector<8x128xf32>
    %c0_12 = arith.constant 0 : index
    %c0_13 = arith.constant 0 : index
    %16 = vector.load %arg7[%c0_12, %c0_13] : memref<8x128xf32, #tpu.memory_space<vmem>>, vector<8x128xf32>
    tpu.vector_store %arg7[%c0_12, %c0_13], %15 {strides = array<i32>} : memref<8x128xf32, #tpu.memory_space<vmem>>, vector<8x128xf32>,
    return
  }
  func.func @transform_0(%arg0: i32, %arg1: i32) -> (i32, i32) {
    %c0_i32 = arith.constant 0 : i32
    %c0_i32_0 = arith.constant 0 : i32
    return %arg0, %c0_i32 : i32, i32
  }
  func.func @transform_1(%arg0: i32, %arg1: i32) -> (i32, i32) {
    %c0_i32 = arith.constant 0 : i32
    %c0_i32_0 = arith.constant 0 : i32
    return %c0_i32, %arg1 : i32, i32
  }
  func.func @transform_2(%arg0: i32, %arg1: i32) -> (i32, i32) {
    %c0_i32 = arith.constant 0 : i32
    %c0_i32_0 = arith.constant 0 : i32
    return %c0_i32, %arg1 : i32, i32
  }
  func.func @transform_3(%arg0: i32, %arg1: i32) -> (i32, i32) {
    %c0_i32 = arith.constant 0 : i32
    %c0_i32_0 = arith.constant 0 : i32
    return %arg1, %c0_i32 : i32, i32
  }
  func.func @transform_4(%arg0: i32, %arg1: i32) -> (i32, i32) {
    %c0_i32 = arith.constant 0 : i32
    %c0_i32_0 = arith.constant 0 : i32
    %c0_i32_1 = arith.constant 0 : i32
    return %c0_i32, %c0_i32_0 : i32, i32
  }
  func.func @transform_5(%arg0: i32, %arg1: i32) -> (i32, i32) {
    %c0_i32 = arith.constant 0 : i32
    %c0_i32_0 = arith.constant 0 : i32
    return %arg0, %c0_i32 : i32, i32
  }
}

</mosaic_0001>

<llo_original>
// kernel: _apply.1
$region0: #{_apply.1}
  #allocation0 [shape = 'u32[]', space=smem, size = 0x4, offset = 0x4, fixed_abs, tag = 'smem constant byte address 0x4 - core index']
  #allocation1 [shape = 'u32[72,128]{1,0:T(1,128)}', space=vmem, size = 0x9000, scoped, tag = 'internal scratch']
  %s0 = inlined_call_operand.vmem [shape: bf16[16,128], index: 0, kind: input, shape index: {}]
  %s1 = inlined_call_operand.hbm [shape: bf16[128,128], index: 1, kind: input, shape index: {}]
  %s2 = inlined_call_operand.vmem [shape: f32[1,128], index: 2, kind: input, shape index: {}]
  %s3 = inlined_call_operand.hbm [shape: bf16[128,128], index: 3, kind: input, shape index: {}]
  %s4 = inlined_call_operand.vmem [shape: f32[1,128], index: 4, kind: input, shape index: {}]
  %s5 = inlined_call_operand.vmem [shape: f32[16,128], index: 5, kind: output, shape index: {}]
  %s6 = sld [smem:[#allocation0]]
  $region65: #{_apply.1} parent=0
    _
  %s8 = ssub.s32 1, %s6
  %s9 = scalar_select 0, %s8, %s6
  $region1: #{_apply.1} parent=0
    #allocation2 [shape = 'u8[32768]{0}', space=vmem, size = 0x8000, scoped, tag = 'input window, operand 1, single buffered']
    #allocation3 [shape = 's32[2]{0}', space=sflag, size = 0x8, scoped, tag = 'scoped memory for _apply.1']
    #allocation4 [shape = 'u8[32768]{0}', space=vmem, size = 0x8000, scoped, tag = 'input window, operand 3, single buffered']
    #allocation5 [shape = 's32[1]{0}', space=sflag, size = 0x4, scoped, tag = 'scoped memory for _apply.1']
    %10 = vsyncpa [#allocation3], 0
    %11 = vsyncpa [#allocation5], 0
    loop: start=0, step=1, limit=4
    $region2: #{_apply.1} parent=1 // loop_pre_header
      _
    $region3: #{_apply.1} parent=1 // loop_header
      %s13 = sphi 0, %s17
      %p14 = scmp.ge.s32.totalorder %s13, 4
      %s20 = sphi 0, %s32
      %s21 = sphi 0, %s28
      %s22 = sphi 0, %s20
      %s23 = sphi 0, %s21
      %s24 = sphi 0, %s22
      %s25 = sphi 0, %s23
      %s35 = sphi 0, %s37
      %s38 = sphi 0, %s35
      %s39 = sphi 0, %s38
      %s55 = sphi 0, %s39
      %s61 = sphi 0, %s63
      %s64 = sphi 0, %s61
      %s65 = sphi 0, %s64
      %s81 = sphi 0, %s65
      %s87 = sphi 0, %s89
      %s90 = sphi 0, %s87
      %s91 = sphi 0, %s90
      %s107 = sphi 0, %s91
      %s113 = sphi 0, %s115
      %s116 = sphi 0, %s113
      %s117 = sphi 0, %s116
      %s133 = sphi 0, %s117
      %s137 = sphi 0, %s137
      %s139 = sphi 0, %s137
      %s140 = sphi 0, %s139
      %s154 = sphi 0, %s140
      %s160 = sphi 0, %s162
      %s163 = sphi 0, %s160
      %s164 = sphi 0, %s163
      %s180 = sphi 0, %s164
    $region4: #{_apply.1} parent=1 // loop_header_branch
      %16 = sbr.rel (%p14) target = $region8
    $region5: #{_apply.1} parent=1 // loop_body
      %s18 = ssub.s32 %s13, 1
      %s19 = ssub.s32 %s13, 2
      %s26 = sadd.s32 1, %s21
      %p27 = scmp.ge.s32.totalorder %s26, 1
      %s28 = scalar_select %p27, 0, %s26
      %s29 = sadd.s32 1, %s20
      %s30 = scalar_select %p27, %s29, %s20
      %p31 = scmp.ge.s32.totalorder %s30, 2
      %s32 = scalar_select %p31, 0, %s30
      %s33 = ssub.s32 %s20, %s32
      %p34 = scmp.eq.s32.totalorder %s33, 0
      %s36 = sadd.s32 %s35, 1
      %s37 = scalar_select %p34, %s35, %s36
      %p40 = pneg %p34
      %p41 = scmp.eq.s32.totalorder %s13, 1
      %p42 = por %p40, %p41
      %p43 = scmp.ne.s32.totalorder %s35, %s38
      %p44 = scmp.eq.s32.totalorder %s13, 0
      %p45 = por %p43, %p44
      %p46 = scmp.ne.s32.totalorder %s35, %s38
      %p47 = scmp.eq.s32.totalorder %s18, 1
      %p48 = por %p46, %p47
      %p49 = scmp.ne.s32.totalorder %s38, %s39
      %p50 = scmp.eq.s32.totalorder %s18, 0
      %p51 = por %p49, %p50
      %p52 = scmp.ne.s32.totalorder %s38, %s39
      %p53 = scmp.eq.s32.totalorder %s19, 1
      %p54 = por %p52, %p53
      %p56 = scmp.ne.s32.totalorder %s39, %s55
      %p57 = scmp.eq.s32.totalorder %s19, 0
      %p58 = por %p56, %p57
      %s59 = ssub.s32 %s21, %s28
      %p60 = scmp.eq.s32.totalorder %s59, 0
      %s62 = sadd.s32 %s61, 1
      %s63 = scalar_select %p60, %s61, %s62
      %p66 = pneg %p60
      %p67 = scmp.eq.s32.totalorder %s13, 1
      %p68 = por %p66, %p67
      %p69 = scmp.ne.s32.totalorder %s61, %s64
      %p70 = scmp.eq.s32.totalorder %s13, 0
      %p71 = por %p69, %p70
      %p72 = scmp.ne.s32.totalorder %s61, %s64
      %p73 = scmp.eq.s32.totalorder %s18, 1
      %p74 = por %p72, %p73
      %p75 = scmp.ne.s32.totalorder %s64, %s65
      %p76 = scmp.eq.s32.totalorder %s18, 0
      %p77 = por %p75, %p76
      %p78 = scmp.ne.s32.totalorder %s64, %s65
      %p79 = scmp.eq.s32.totalorder %s19, 1
      %p80 = por %p78, %p79
      %p82 = scmp.ne.s32.totalorder %s65, %s81
      %p83 = scmp.eq.s32.totalorder %s19, 0
      %p84 = por %p82, %p83
      %s85 = ssub.s32 %s21, %s28
      %p86 = scmp.eq.s32.totalorder %s85, 0
      %s88 = sadd.s32 %s87, 1
      %s89 = scalar_select %p86, %s87, %s88
      %p92 = pneg %p86
      %p93 = scmp.eq.s32.totalorder %s13, 1
      %p94 = por %p92, %p93
      %p95 = scmp.ne.s32.totalorder %s87, %s90
      %p96 = scmp.eq.s32.totalorder %s13, 0
      %p97 = por %p95, %p96
      %p98 = scmp.ne.s32.totalorder %s87, %s90
      %p99 = scmp.eq.s32.totalorder %s18, 1
      %p100 = por %p98, %p99
      %p101 = scmp.ne.s32.totalorder %s90, %s91
      %p102 = scmp.eq.s32.totalorder %s18, 0
      %p103 = por %p101, %p102
      %p104 = scmp.ne.s32.totalorder %s90, %s91
      %p105 = scmp.eq.s32.totalorder %s19, 1
      %p106 = por %p104, %p105
      %p108 = scmp.ne.s32.totalorder %s91, %s107
      %p109 = scmp.eq.s32.totalorder %s19, 0
      %p110 = por %p108, %p109
      %s111 = ssub.s32 %s21, %s28
      %p112 = scmp.eq.s32.totalorder %s111, 0
      %s114 = sadd.s32 %s113, 1
      %s115 = scalar_select %p112, %s113, %s114
      %p118 = pneg %p112
      %p119 = scmp.eq.s32.totalorder %s13, 1
      %p120 = por %p118, %p119
      %p121 = scmp.ne.s32.totalorder %s113, %s116
      %p122 = scmp.eq.s32.totalorder %s13, 0
      %p123 = por %p121, %p122
      %p124 = scmp.ne.s32.totalorder %s113, %s116
      %p125 = scmp.eq.s32.totalorder %s18, 1
      %p126 = por %p124, %p125
      %p127 = scmp.ne.s32.totalorder %s116, %s117
      %p128 = scmp.eq.s32.totalorder %s18, 0
      %p129 = por %p127, %p128
      %p130 = scmp.ne.s32.totalorder %s116, %s117
      %p131 = scmp.eq.s32.totalorder %s19, 1
      %p132 = por %p130, %p131
      %p134 = scmp.ne.s32.totalorder %s117, %s133
      %p135 = scmp.eq.s32.totalorder %s19, 0
      %p136 = por %p134, %p135
      %s138 = sadd.s32 %s137, 1
      %p141 = scmp.eq.s32.totalorder %s13, 1
      %p142 = scmp.ne.s32.totalorder %s137, %s139
      %p143 = scmp.eq.s32.totalorder %s13, 0
      %p144 = por %p142, %p143
      %p145 = scmp.ne.s32.totalorder %s137, %s139
      %p146 = scmp.eq.s32.totalorder %s18, 1
      %p147 = por %p145, %p146
      %p148 = scmp.ne.s32.totalorder %s139, %s140
      %p149 = scmp.eq.s32.totalorder %s18, 0
      %p150 = por %p148, %p149
      %p151 = scmp.ne.s32.totalorder %s139, %s140
      %p152 = scmp.eq.s32.totalorder %s19, 1
      %p153 = por %p151, %p152
      %p155 = scmp.ne.s32.totalorder %s140, %s154
      %p156 = scmp.eq.s32.totalorder %s19, 0
      %p157 = por %p155, %p156
      %s158 = ssub.s32 %s20, %s32
      %p159 = scmp.eq.s32.totalorder %s158, 0
      %s161 = sadd.s32 %s160, 1
      %s162 = scalar_select %p159, %s160, %s161
      %p165 = pneg %p159
      %p166 = scmp.eq.s32.totalorder %s13, 1
      %p167 = por %p165, %p166
      %p168 = scmp.ne.s32.totalorder %s160, %s163
      %p169 = scmp.eq.s32.totalorder %s13, 0
      %p170 = por %p168, %p169
      %p171 = scmp.ne.s32.totalorder %s160, %s163
      %p172 = scmp.eq.s32.totalorder %s18, 1
      %p173 = por %p171, %p172
      %p174 = scmp.ne.s32.totalorder %s163, %s164
      %p175 = scmp.eq.s32.totalorder %s18, 0
      %p176 = por %p174, %p175
      %p177 = scmp.ne.s32.totalorder %s163, %s164
      %p178 = scmp.eq.s32.totalorder %s19, 1
      %p179 = por %p177, %p178
      %p181 = scmp.ne.s32.totalorder %s164, %s180
      %p182 = scmp.eq.s32.totalorder %s19, 0
      %p183 = por %p181, %p182
      %p184 = scmp.le.s32.totalorder 1, %s13
      %p185 = scmp.lt.s32.totalorder %s13, 3
      %p186 = pnand %p184, %p185
      %p187 = pneg %p186
      // Predicated region
      $region9: #{_apply.1} parent=5 // pred_check
        _
      $region10: #{_apply.1} parent=5 // pred_check_branch
        %189 = sbr.rel (%p186) target = $region12
      $region11: #{_apply.1} parent=5 // pred_region
        %s190 = ssub.s32 %s13, 1
        // Predicated region
        $region13: #{_apply.1} parent=11 // pred_check
          %p191 = pneg %p77
        $region14: #{_apply.1} parent=11 // pred_check_branch
          %193 = sbr.rel (%p191) target = $region16
        $region15: #{_apply.1} parent=11 // pred_region
          %195 = vsyncadd [#allocation3], 0
          %s196 = smul.addr %s23, 4
          %s197 = scalar_lea.hbm %s1, %s196
          %s198 = sshll.u32 %s197, 4
          %s199 = int_to_ptr.hbm [resolvable:$true] %s198
          %s200 = sshll.u32 [#allocation2], 4
          %s201 = int_to_ptr.vmem [resolvable:$true] %s200
          %206 = dma.hbm_to_vmem [thread:$0]  %s199, 1024, %s201, [#allocation3], 64, 64, 4
        $region16: #{_apply.1} parent=11 // pred_fallthru
          _
        // Predicated region
        $region17: #{_apply.1} parent=11 // pred_check
          %p207 = pneg %p103
        $region18: #{_apply.1} parent=11 // pred_check_branch
          %209 = sbr.rel (%p207) target = $region20
        $region19: #{_apply.1} parent=11 // pred_region
          %p210 = scmp.lt.s32.totalorder %s23, 0
          %s211 = scalar_select %p210, %s23, 0
          %s212 = scalar_lea.vmem %s2, %s211
        $region20: #{_apply.1} parent=11 // pred_fallthru
          _
        // Predicated region
        $region21: #{_apply.1} parent=11 // pred_check
          %p213 = pneg %p129
        $region22: #{_apply.1} parent=11 // pred_check_branch
          %215 = sbr.rel (%p213) target = $region24
        $region23: #{_apply.1} parent=11 // pred_region
          %s216 = smul.u32 16, %s23
          %218 = vsyncadd [#allocation5], 0
          %s219 = smul.addr %s216, 4
          %s220 = scalar_lea.hbm %s3, %s219
          %s221 = sshll.u32 %s220, 4
          %s222 = int_to_ptr.hbm [resolvable:$true] %s221
          %s223 = sshll.u32 [#allocation4], 4
          %s224 = int_to_ptr.vmem [resolvable:$true] %s223
          %229 = dma.hbm_to_vmem [thread:$0]  %s222, 1024, %s224, [#allocation5], 64, 64, 4
        $region24: #{_apply.1} parent=11 // pred_fallthru
          _
        // Predicated region
        $region25: #{_apply.1} parent=11 // pred_check
          %p230 = pneg %p150
        $region26: #{_apply.1} parent=11 // pred_check_branch
          %232 = sbr.rel (%p230) target = $region28
        $region27: #{_apply.1} parent=11 // pred_region
          _
        $region28: #{_apply.1} parent=11 // pred_fallthru
          _
      $region12: #{_apply.1} parent=5 // pred_fallthru
        _
      %p233 = scmp.lt.s32.totalorder %s13, 2
      // Predicated region
      $region29: #{_apply.1} parent=5 // pred_check
        %p234 = pneg %p233
      $region30: #{_apply.1} parent=5 // pred_check_branch
        %236 = sbr.rel (%p234) target = $region32
      $region31: #{_apply.1} parent=5 // pred_region
        // Predicated region
        $region33: #{_apply.1} parent=31 // pred_check
          %p237 = pneg %p45
        $region34: #{_apply.1} parent=31 // pred_check_branch
          %239 = sbr.rel (%p237) target = $region36
        $region35: #{_apply.1} parent=31 // pred_region
          %p240 = scmp.lt.s32.totalorder %s20, 1
          %s241 = scalar_select %p240, %s20, 1
          %s242 = smul.addr %s241, 4
          %s243 = scalar_lea.vmem %s0, %s242
        $region36: #{_apply.1} parent=31 // pred_fallthru
          _
      $region32: #{_apply.1} parent=5 // pred_fallthru
        _
      %p244 = scmp.le.s32.totalorder 1, %s13
      %p245 = scmp.lt.s32.totalorder %s13, 3
      %p246 = pnand %p244, %p245
      %p247 = pneg %p246
      // Predicated region
      $region37: #{_apply.1} parent=5 // pred_check
        _
      $region38: #{_apply.1} parent=5 // pred_check_branch
        %249 = sbr.rel (%p246) target = $region40
      $region39: #{_apply.1} parent=5 // pred_region
        %s250 = ssub.s32 %s13, 1
        // Predicated region
        $region41: #{_apply.1} parent=39 // pred_check
          %p251 = pneg %p77
        $region42: #{_apply.1} parent=39 // pred_check_branch
          %253 = sbr.rel (%p251) target = $region44
        $region43: #{_apply.1} parent=39 // pred_region
          %255 = dma.done [#allocation3], 1024
        $region44: #{_apply.1} parent=39 // pred_fallthru
          _
        // Predicated region
        $region45: #{_apply.1} parent=39 // pred_check
          %p256 = pneg %p129
        $region46: #{_apply.1} parent=39 // pred_check_branch
          %258 = sbr.rel (%p256) target = $region48
        $region47: #{_apply.1} parent=39 // pred_region
          %260 = dma.done [#allocation5], 1024
        $region48: #{_apply.1} parent=39 // pred_fallthru
          _
        %p261 = scmp.lt.s32.totalorder %s22, 1
        %s262 = scalar_select %p261, %s22, 1
        %s263 = smul.addr %s262, 4
        %s264 = scalar_lea.vmem %s0, %s263
        %p265 = pneg %p51
        %p266 = pneg %p48
        %p267 = pneg %p77
        %p268 = pneg %p74
        %p269 = scmp.lt.s32.totalorder %s23, 0
        %s270 = scalar_select %p269, %s23, 0
        %s271 = scalar_lea.vmem %s2, %s270
        %p272 = pneg %p103
        %p273 = pneg %p100
        %p274 = pneg %p129
        %p275 = pneg %p126
        %p276 = pneg %p150
        %p277 = pneg %p147
        %p278 = pneg %p176
        %p279 = pneg %p173
        %p280 = scmp.lt.s32.totalorder %s22, 1
        %s281 = scalar_select %p280, %s22, 1
        %s282 = smul.addr %s281, 8
        %s283 = scalar_lea.vmem %s5, %s282
        %p284 = scmp.lt.s32.totalorder %s22, 1
        %s285 = scalar_select %p284, %s22, 1
        %s286 = smul.addr %s285, 4
        %s287 = scalar_lea.vmem %s0, %s286
        %p288 = scmp.lt.s32.totalorder %s23, 0
        %s289 = scalar_select %p288, %s23, 0
        %s290 = scalar_lea.vmem %s2, %s289
        %s291 = smul.u32 16, %s23
        %p292 = scmp.lt.s32.totalorder %s22, 1
        %s293 = scalar_select %p292, %s22, 1
        %s294 = smul.addr %s293, 8
        %s295 = scalar_lea.vmem %s5, %s294
        %p296 = scmp.eq.s32.totalorder %s23, 0
        // Predicated region
        $region49: #{_apply.1} parent=39 // pred_check
          %p297 = pneg %p296
        $region50: #{_apply.1} parent=39 // pred_check_branch
          %299 = sbr.rel (%p297) target = $region52
        $region51: #{_apply.1} parent=39 // pred_region
          %v300 = vld [vmem:[%s4] sm:$0x1]
          %v302 = vperm.slane %v300, 0
          %304 = vst [vmem:[%s295] sm:$0xff] %v302
        $region52: #{_apply.1} parent=39 // pred_fallthru
          _
        %v305 = vld [vmem:[%s287] sm:$0xf]
        %v306 = vld [vmem:[#allocation2] sm:$0xf]
        %v307 = vld [vmem:[#allocation2 + $0x4] sm:$0xf]
        %v308 = vld [vmem:[#allocation2 + $0x8] sm:$0xf]
        %v309 = vld [vmem:[#allocation2 + $0xc] sm:$0xf]
        %v310 = vld [vmem:[#allocation2 + $0x10] sm:$0xf]
        %v311 = vld [vmem:[#allocation2 + $0x14] sm:$0xf]
        %v312 = vld [vmem:[#allocation2 + $0x18] sm:$0xf]
        %v313 = vld [vmem:[#allocation2 + $0x1c] sm:$0xf]
        %v314 = vld [vmem:[#allocation2 + $0x20] sm:$0xf]
        %v315 = vld [vmem:[#allocation2 + $0x24] sm:$0xf]
        %v316 = vld [vmem:[#allocation2 + $0x28] sm:$0xf]
        %v317 = vld [vmem:[#allocation2 + $0x2c] sm:$0xf]
        %v318 = vld [vmem:[#allocation2 + $0x30] sm:$0xf]
        %v319 = vld [vmem:[#allocation2 + $0x34] sm:$0xf]
        %v320 = vld [vmem:[#allocation2 + $0x38] sm:$0xf]
        %v321 = vld [vmem:[#allocation2 + $0x3c] sm:$0xf]
        %v322 = vld [vmem:[%s290] sm:$0x1]
        %v324 = vperm.slane %v322, 0
        %v342 = vunpack.c.l.b16 %v306
        %v343 = vunpack.c.l.b16 %v307
        %v344 = vunpack.c.l.b16 %v308
        %v345 = vunpack.c.l.b16 %v309
        %v346 = vunpack.c.l.b16 %v310
        %v347 = vunpack.c.l.b16 %v311
        %v348 = vunpack.c.l.b16 %v312
        %v349 = vunpack.c.l.b16 %v313
        %v350 = vunpack.c.l.b16 %v314
        %v351 = vunpack.c.l.b16 %v315
        %v352 = vunpack.c.l.b16 %v316
        %v353 = vunpack.c.l.b16 %v317
        %v354 = vunpack.c.l.b16 %v318
        %v355 = vunpack.c.l.b16 %v319
        %v356 = vunpack.c.l.b16 %v320
        %v357 = vunpack.c.l.b16 %v321
        %v358 = vpack.c.b16 %v343, %v342
        %v359 = vpack.c.b16 %v345, %v344
        %v360 = vpack.c.b16 %v347, %v346
        %v361 = vpack.c.b16 %v349, %v348
        %v362 = vpack.c.b16 %v351, %v350
        %v363 = vpack.c.b16 %v353, %v352
        %v364 = vpack.c.b16 %v355, %v354
        %v365 = vpack.c.b16 %v357, %v356
        %374 = vmatpush.bf16.msra.mxu0 %v365
        %375 = vmatpush.bf16.msra.mxu0 %v364
        %376 = vmatpush.bf16.msra.mxu0 %v363
        %377 = vmatpush.bf16.msra.mxu0 %v362
        %378 = vmatpush.bf16.msra.mxu0 %v361
        %379 = vmatpush.bf16.msra.mxu0 %v360
        %380 = vmatpush.bf16.msra.mxu0 %v359
        %381 = vmatpush.bf16.msra.mxu0 %v358
        %382 = vmatmul.bf16.gmra.mxu0 %v305
        %v383 = vpop.f32.mrf.mxu0
        %v384 = vadd.f32 %v324, %v383
        %v385 = vpop.f32.mrf.mxu0
        %386 = vdwg.mxu0
        %v387 = vmax.f32 %v384, 0.0
        %v388 = vld [vmem:[%s295] sm:$0xff]
        %v389 = vpack.c.bf16 %v387, %v387
        %v390 = vld [vmem:[#allocation4] sm:$0xf]
        %v391 = vld [vmem:[#allocation4 + $0x4] sm:$0xf]
        %v392 = vld [vmem:[#allocation4 + $0x8] sm:$0xf]
        %v393 = vld [vmem:[#allocation4 + $0xc] sm:$0xf]
        %v394 = vld [vmem:[#allocation4 + $0x10] sm:$0xf]
        %v395 = vld [vmem:[#allocation4 + $0x14] sm:$0xf]
        %v396 = vld [vmem:[#allocation4 + $0x18] sm:$0xf]
        %v397 = vld [vmem:[#allocation4 + $0x1c] sm:$0xf]
        %v398 = vld [vmem:[#allocation4 + $0x20] sm:$0xf]
        %v399 = vld [vmem:[#allocation4 + $0x24] sm:$0xf]
        %v400 = vld [vmem:[#allocation4 + $0x28] sm:$0xf]
        %v401 = vld [vmem:[#allocation4 + $0x2c] sm:$0xf]
        %v402 = vld [vmem:[#allocation4 + $0x30] sm:$0xf]
        %v403 = vld [vmem:[#allocation4 + $0x34] sm:$0xf]
        %v404 = vld [vmem:[#allocation4 + $0x38] sm:$0xf]
        %v405 = vld [vmem:[#allocation4 + $0x3c] sm:$0xf]
        %v422 = vunpack.c.l.b16 %v390
        %v423 = vunpack.c.l.b16 %v391
        %v424 = vunpack.c.l.b16 %v392
        %v425 = vunpack.c.l.b16 %v393
        %v426 = vunpack.c.l.b16 %v394
        %v427 = vunpack.c.l.b16 %v395
        %v428 = vunpack.c.l.b16 %v396
        %v429 = vunpack.c.l.b16 %v397
        %v430 = vunpack.c.l.b16 %v398
        %v431 = vunpack.c.l.b16 %v399
        %v432 = vunpack.c.l.b16 %v400
        %v433 = vunpack.c.l.b16 %v401
        %v434 = vunpack.c.l.b16 %v402
        %v435 = vunpack.c.l.b16 %v403
        %v436 = vunpack.c.l.b16 %v404
        %v437 = vunpack.c.l.b16 %v405
        %v438 = vpack.c.b16 %v423, %v422
        %v439 = vpack.c.b16 %v425, %v424
        %v440 = vpack.c.b16 %v427, %v426
        %v441 = vpack.c.b16 %v429, %v428
        %v442 = vpack.c.b16 %v431, %v430
        %v443 = vpack.c.b16 %v433, %v432
        %v444 = vpack.c.b16 %v435, %v434
        %v445 = vpack.c.b16 %v437, %v436
        %454 = vmatpush.bf16.msra.mxu0 %v445
        %455 = vmatpush.bf16.msra.mxu0 %v444
        %456 = vmatpush.bf16.msra.mxu0 %v443
        %457 = vmatpush.bf16.msra.mxu0 %v442
        %458 = vmatpush.bf16.msra.mxu0 %v441
        %459 = vmatpush.bf16.msra.mxu0 %v440
        %460 = vmatpush.bf16.msra.mxu0 %v439
        %461 = vmatpush.bf16.msra.mxu0 %v438
        %462 = vmatmul.bf16.gmra.mxu0 %v389
        %v463 = vpop.f32.mrf.mxu0
        %v464 = vadd.f32 0.0, %v463
        %v465 = vpop.f32.mrf.mxu0
        %466 = vdwg.mxu0
        %v467 = vadd.f32 %v388, %v464
        %468 = vst [vmem:[%s295] sm:$0xff] %v467
        %p469 = scmp.lt.s32.totalorder %s22, 1
        %s470 = scalar_select %p469, %s22, 1
        %s471 = smul.addr %s470, 8
        %s472 = scalar_lea.vmem %s5, %s471
        // Predicated region
        $region53: #{_apply.1} parent=39 // pred_check
          %p473 = pneg %p173
        $region54: #{_apply.1} parent=39 // pred_check_branch
          %475 = sbr.rel (%p473) target = $region56
        $region55: #{_apply.1} parent=39 // pred_region
          _
        $region56: #{_apply.1} parent=39 // pred_fallthru
          _
      $region40: #{_apply.1} parent=5 // pred_fallthru
        _
      %p476 = scmp.le.s32.totalorder 2, %s13
      // Predicated region
      $region57: #{_apply.1} parent=5 // pred_check
        %p477 = pneg %p476
      $region58: #{_apply.1} parent=5 // pred_check_branch
        %479 = sbr.rel (%p477) target = $region60
      $region59: #{_apply.1} parent=5 // pred_region
        %s480 = ssub.s32 %s13, 2
        // Predicated region
        $region61: #{_apply.1} parent=59 // pred_check
          %p481 = pneg %p179
        $region62: #{_apply.1} parent=59 // pred_check_branch
          %483 = sbr.rel (%p481) target = $region64
        $region63: #{_apply.1} parent=59 // pred_region
          %p484 = scmp.lt.s32.totalorder %s24, 1
          %s485 = scalar_select %p484, %s24, 1
          %s486 = smul.addr %s485, 8
          %s487 = scalar_lea.vmem %s5, %s486
        $region64: #{_apply.1} parent=59 // pred_fallthru
          _
      $region60: #{_apply.1} parent=5 // pred_fallthru
        _
    $region6: #{_apply.1} parent=1 // loop_footer
      %s17 = sadd.s32 1, %s13
    $region7: #{_apply.1} parent=1 // loop_footer_branch
      %12 = sbr.rel target = $region3
    $region8: #{_apply.1} parent=1 // loop_exit
      _
    %488 = vsyncpa [#allocation3], 1
    %s489 = scalar_lea.sflag [#allocation3], 1
    %490 = vsyncpa %s489, 1
    %491 = vsyncpa [#allocation5], 1

</llo_original>
